<compile_context>
chip_gen: v7x
topology: tpu7x:2x2x1
jax: 0.10.0
libtpu: 0.0.40
codegen_flags: <defaults>
</compile_context>

<pallas_src>
import jax
import jax.numpy as jnp
from jax.experimental import pallas as pl
from jax.experimental.pallas import tpu as pltpu


# ----------------------------- Pallas kernel --------------------------------
def _decode_matmul_kernel(wt_ref, x_ref, b_ref, o_ref):
    # wt: (N,  K)   full 1x1-conv weight (transposed), resident across grid
    # x : (K, tm)   latent tile, channels on sublanes, pixels on lanes
    # b : (N,  1)   bias (lane-broadcast), resident across grid
    # o : (N, tm)   lane-dense output tile
    acc = jnp.dot(wt_ref[...], x_ref[...], preferred_element_type=jnp.float32)
    acc = acc + b_ref[...]                            # (N,1) lane-broadcast add
    o_ref[...] = jnp.tanh(acc).astype(o_ref.dtype)    # tanh -> EUP slot, f32


def _decode_matmul(x_km, wt, b_col, *, tm=512):
    """(K, M), (N, K), (N, 1) -> (N, M) = tanh(wt @ x + b).

    Full N resident (N is tiny); grid tiles only the big lane axis M.
    At test scale (M = 128) this is a single-step grid == one 16x128 block.
    """
    K, M = x_km.shape
    N = wt.shape[0]

    tm = min(tm, M)
    if M % tm != 0:                      # fall back to one full-M block
        tm = M
    grid = (M // tm,)

    flops = 2 * M * N * K
    bytes_accessed = 4 * (K * M + N * K + N + N * M)

    return pl.pallas_call(
        _decode_matmul_kernel,
        out_shape=jax.ShapeDtypeStruct((N, M), x_km.dtype),
        grid=grid,
        in_specs=[
            pl.BlockSpec((N, K), lambda j: (0, 0)),    # weight: constant block
            pl.BlockSpec((K, tm), lambda j: (0, j)),   # latent lane tile
            pl.BlockSpec((N, 1), lambda j: (0, 0)),    # bias: constant block
        ],
        out_specs=pl.BlockSpec((N, tm), lambda j: (0, j)),
        compiler_params=pltpu.CompilerParams(
            dimension_semantics=("parallel",),          # M axis feeds both v7x TCs
            vmem_limit_bytes=32 * 1024 * 1024,          # fits v7x's 64 MiB VMEM
        ),
        cost_estimate=pl.CostEstimate(
            flops=flops,
            transcendentals=N * M,
            bytes_accessed=bytes_accessed),
    )(wt, x_km, b_col)


# ----------------------- SimpleVaeDecoder forward pass ----------------------
def simple_vae_decoder_forward(latent, w, b, out_channels, out_height, out_width,
                               scale):
    """Equivalent to the PyTorch per-slice decode + scatter_ loop, batched."""
    B, c_lat, H, W = latent.shape
    N = w.shape[1]                               # out_channels * scale * scale
    M = B * H * W
    assert N == out_channels * scale * scale
    assert out_height == H * scale and out_width == W * scale

    # One layout transform for the whole batch: (B,C,H,W) -> (C, B*H*W),
    # putting the big pixel axis on lanes (lane-dense kernel I/O).
    x_km = jnp.transpose(latent, (1, 0, 2, 3)).reshape(c_lat, M)
    wt = jnp.transpose(w)                        # (N, C_lat)
    b_col = jnp.reshape(b, (N, 1))

    out_nm = _decode_matmul(x_km, wt, b_col)     # (N, M), lane-dense

    # Pixel-shuffle + batch unfold for the whole batch:
    # (out_ch, s, s, B, H, W) -> (B, out_ch, H, s, W, s) -> (B, out_ch, Hs, Ws)
    y = out_nm.reshape(out_channels, scale, scale, B, H, W)
    y = jnp.transpose(y, (3, 0, 4, 1, 5, 2))
    return y.reshape(B, out_channels, out_height, out_width).astype(latent.dtype)


if __name__ == "__main__":
    # Small shapes consistent with the forward pass.
    batch = 2
    latent_channels = 4
    lat_h = lat_w = 8
    scale = 2
    out_channels = 4
    out_height = lat_h * scale   # 16
    out_width = lat_w * scale    # 16

    key = jax.random.PRNGKey(0)
    k_lat, k_w, k_b = jax.random.split(key, 3)

    latent = jax.random.normal(
        k_lat, (batch, latent_channels, lat_h, lat_w), dtype=jnp.float32)
    # 1x1 conv weights as a matmul: (C_lat, out_ch * s * s)
    w = jax.random.normal(
        k_w, (latent_channels, out_channels * scale * scale),
        dtype=jnp.float32) * 0.1
    b = jax.random.normal(
        k_b, (1, out_channels * scale * scale), dtype=jnp.float32) * 0.1

    fwd = jax.jit(lambda lat: simple_vae_decoder_forward(
        lat, w, b, out_channels, out_height, out_width, scale))
    out = jax.block_until_ready(fwd(latent))

    assert out.shape == (batch, out_channels, out_height, out_width), out.shape
    assert out.dtype == latent.dtype

    # Pure-JAX reference of the synthetic decoder, per slice (mirrors the
    # original PyTorch loop + scatter semantics).
    def ref_decode(x_slice):
        x2d = jnp.transpose(x_slice, (1, 2, 0)).reshape(
            lat_h * lat_w, latent_channels)
        y2d = jnp.tanh(x2d @ w + b)
        y = y2d.reshape(lat_h, lat_w, out_channels, scale, scale)
        return jnp.transpose(y, (2, 0, 3, 1, 4)).reshape(
            out_channels, out_height, out_width)

    ref = jnp.stack([ref_decode(latent[i]) for i in range(batch)], axis=0)
    assert jnp.allclose(out, ref, atol=1e-5, rtol=1e-5)

    print("KERNEL_OK")
</pallas_src>

<mosaic_0001>
module attributes {stable_mosaic.version = 11 : i64} {
  func.func @_decode_matmul_kernel(%arg0: i32, %arg1: memref<16x4xf32, #tpu.memory_space<vmem>>, %arg2: memref<4x128xf32, #tpu.memory_space<vmem>>, %arg3: memref<16x1xf32, #tpu.memory_space<vmem>>, %arg4: memref<16x128xf32, #tpu.memory_space<vmem>>) attributes {dimension_semantics = [#tpu.dimension_semantics<parallel>], iteration_bounds = array<i64: 1>, scalar_prefetch = 0 : i64, scratch_operands = 0 : i64, tpu.core_type = #tpu.core_type<tc>, window_params = [{pipeline_mode = #tpu.pipeline_mode<synchronous>, transform_indices = @transform_0, window_bounds = array<i64: 16, 4>}, {transform_indices = @transform_1, window_bounds = array<i64: 4, 128>}, {pipeline_mode = #tpu.pipeline_mode<synchronous>, transform_indices = @transform_2, window_bounds = array<i64: 16, 1>}, {transform_indices = @transform_3, window_bounds = array<i64: 16, 128>}]} {
    %c0 = arith.constant 0 : index
    %c0_0 = arith.constant 0 : index
    %0 = vector.load %arg1[%c0, %c0_0] : memref<16x4xf32, #tpu.memory_space<vmem>>, vector<16x4xf32>
    %c0_1 = arith.constant 0 : index
    %c0_2 = arith.constant 0 : index
    %1 = vector.load %arg2[%c0_1, %c0_2] : memref<4x128xf32, #tpu.memory_space<vmem>>, vector<4x128xf32>
    %cst = arith.constant dense<0.000000e+00> : vector<16x128xf32>
    %2 = tpu.matmul %0, %1, %cst {dimension_numbers = #tpu.dot_dimension_numbers<[1], [0], [0], [1], [0, 0, 1, 1], [], []>} : vector<16x4xf32>, vector<4x128xf32>, vector<16x128xf32> -> vector<16x128xf32>
    %c0_3 = arith.constant 0 : index
    %c0_4 = arith.constant 0 : index
    %3 = vector.load %arg3[%c0_3, %c0_4] : memref<16x1xf32, #tpu.memory_space<vmem>>, vector<16x1xf32>
    %4 = vector.broadcast %3 : vector<16x1xf32> to vector<16x128xf32>
    %5 = arith.addf %2, %4 : vector<16x128xf32>
    %6 = math.tanh %5 : vector<16x128xf32>
    %c0_5 = arith.constant 0 : index
    %c0_6 = arith.constant 0 : index
    %7 = vector.load %arg4[%c0_5, %c0_6] : memref<16x128xf32, #tpu.memory_space<vmem>>, vector<16x128xf32>
    tpu.vector_store %arg4[%c0_5, %c0_6], %6 {strides = array<i32>} : memref<16x128xf32, #tpu.memory_space<vmem>>, vector<16x128xf32>,
    return
  }
  func.func @transform_0(%arg0: i32) -> (i32, i32) {
    %c0_i32 = arith.constant 0 : i32
    %c0_i32_0 = arith.constant 0 : i32
    %c0_i32_1 = arith.constant 0 : i32
    return %c0_i32, %c0_i32_0 : i32, i32
  }
  func.func @transform_1(%arg0: i32) -> (i32, i32) {
    %c0_i32 = arith.constant 0 : i32
    %c0_i32_0 = arith.constant 0 : i32
    return %c0_i32, %arg0 : i32, i32
  }
  func.func @transform_2(%arg0: i32) -> (i32, i32) {
    %c0_i32 = arith.constant 0 : i32
    %c0_i32_0 = arith.constant 0 : i32
    %c0_i32_1 = arith.constant 0 : i32
    return %c0_i32, %c0_i32_0 : i32, i32
  }
  func.func @transform_3(%arg0: i32) -> (i32, i32) {
    %c0_i32 = arith.constant 0 : i32
    %c0_i32_0 = arith.constant 0 : i32
    return %c0_i32, %arg0 : i32, i32
  }
}

</mosaic_0001>

<llo_original>
// kernel: _lambda_.1
$region0: #{_lambda_.1}
  #allocation0 [shape = 'u32[]', space=smem, size = 0x4, offset = 0x4, fixed_abs, tag = 'smem constant byte address 0x4 - core index']
  #allocation1 [shape = 'u32[144,128]{1,0:T(1,128)}', space=vmem, size = 0x12000, scoped, tag = 'internal scratch']
  %s0 = inlined_call_operand.vmem [shape: f32[16,4], index: 0, kind: input, shape index: {}]
  %s1 = inlined_call_operand.vmem [shape: f32[4,128], index: 1, kind: input, shape index: {}]
  %s2 = inlined_call_operand.vmem [shape: f32[16,1], index: 2, kind: input, shape index: {}]
  %s3 = inlined_call_operand.vmem [shape: f32[16,128], index: 3, kind: output, shape index: {}]
  %s4 = sld [smem:[#allocation0]]
  $region22: #{_lambda_.1} parent=0
    _
  %s6 = ssub.s32 1, %s4
  %s7 = scalar_select 0, %s6, %s4
  // Predicated region
  $region2: #{_lambda_.1} parent=0 // pred_check
    _
  $region3: #{_lambda_.1} parent=0 // pred_check_branch
    %9 = sbr.rel (0) target = $region5
  $region4: #{_lambda_.1} parent=0 // pred_region
    _
  $region5: #{_lambda_.1} parent=0 // pred_fallthru
    _
  // Predicated region
  $region6: #{_lambda_.1} parent=0 // pred_check
    _
  $region7: #{_lambda_.1} parent=0 // pred_check_branch
    %11 = sbr.rel (0) target = $region9
  $region8: #{_lambda_.1} parent=0 // pred_region
    _
  $region9: #{_lambda_.1} parent=0 // pred_fallthru
    _
  // Predicated region
  $region10: #{_lambda_.1} parent=0 // pred_check
    _
  $region11: #{_lambda_.1} parent=0 // pred_check_branch
    %13 = sbr.rel (0) target = $region13
  $region12: #{_lambda_.1} parent=0 // pred_region
    _
  $region13: #{_lambda_.1} parent=0 // pred_fallthru
    _
  %v14 = vld [vmem:[%s0] sm:$0xff]
  %v15 = vld [vmem:[%s0 + $0x8] sm:$0xff]
  %v16 = vld [vmem:[%s1] sm:$0xf]
  %v17 = vld [vmem:[%s2] sm:$0xff]
  %v18 = vld [vmem:[%s2 + $0x8] sm:$0xff]
  %20 = vset.pattern.permute.xlu0 0
  %21 = vperm.xlu0 %20, %v17
  %v22 = vpop.permute.xlu0 %21
  %25 = vset.pattern.permute.xlu0 0
  %26 = vperm.xlu0 %25, %v18
  %v27 = vpop.permute.xlu0 %26
  %vm29 = vcmask 31744
  %v31 = vsel %vm29, %v14, 0
  %v34 = vsel %vm29, %v15, 0
  %vm36 = vcmask 1043456
  %v38 = vsel %vm36, %v16, 0
  %40 = vmatprep.subr.mxu0 0.0
  %41 = vmatpush1.msra.mxu0 %v38
  %42 = vmatprep.subr.mxu0 0.0
  %43 = vmatpush1.msra.mxu0 0.0
  %44 = vmatprep.subr.mxu0 0.0
  %45 = vmatpush1.msra.mxu0 0.0
  %46 = vmatprep.subr.mxu0 0.0
  %47 = vmatpush1.msra.mxu0 0.0
  %48 = vmatprep.subr.mxu0 0.0
  %49 = vmatpush1.msra.mxu0 0.0
  %50 = vmatprep.subr.mxu0 0.0
  %51 = vmatpush1.msra.mxu0 0.0
  %52 = vmatprep.subr.mxu0 0.0
  %53 = vmatpush1.msra.mxu0 0.0
  %54 = vmatprep.subr.mxu0 0.0
  %55 = vmatpush1.msra.mxu0 0.0
  %56 = vmatprep.subr.mxu0 0.0
  %57 = vmatpush1.msra.mxu0 0.0
  %58 = vmatprep.subr.mxu0 0.0
  %59 = vmatpush1.msra.mxu0 0.0
  %60 = vmatprep.subr.mxu0 0.0
  %61 = vmatpush1.msra.mxu0 0.0
  %62 = vmatprep.subr.mxu0 0.0
  %63 = vmatpush1.msra.mxu0 0.0
  %64 = vmatprep.subr.mxu0 0.0
  %65 = vmatpush1.msra.mxu0 0.0
  %66 = vmatprep.subr.mxu0 0.0
  %67 = vmatpush1.msra.mxu0 0.0
  %68 = vmatprep.subr.mxu0 0.0
  %69 = vmatpush1.msra.mxu0 0.0
  %70 = vmatprep.subr.mxu0 0.0
  %71 = vmatpush1.msra.mxu0 0.0
  %72 = vmatprep.subr.mxu0 0.0
  %73 = vmatpush1.msra.mxu0 0.0
  %74 = vmatprep.subr.mxu0 0.0
  %75 = vmatpush1.msra.mxu0 0.0
  %76 = vmatprep.subr.mxu0 0.0
  %77 = vmatpush1.msra.mxu0 0.0
  %78 = vmatprep.subr.mxu0 0.0
  %79 = vmatpush1.msra.mxu0 0.0
  %80 = vmatprep.subr.mxu0 0.0
  %81 = vmatpush1.msra.mxu0 0.0
  %82 = vmatprep.subr.mxu0 0.0
  %83 = vmatpush1.msra.mxu0 0.0
  %84 = vmatprep.subr.mxu0 0.0
  %85 = vmatpush1.msra.mxu0 0.0
  %86 = vmatprep.subr.mxu0 0.0
  %87 = vmatpush1.msra.mxu0 0.0
  %88 = vmatprep.subr.mxu0 0.0
  %89 = vmatpush1.msra.mxu0 0.0
  %90 = vmatprep.subr.mxu0 0.0
  %91 = vmatpush1.msra.mxu0 0.0
  %92 = vmatprep.subr.mxu0 0.0
  %93 = vmatpush1.msra.mxu0 0.0
  %94 = vmatprep.subr.mxu0 0.0
  %95 = vmatpush1.msra.mxu0 0.0
  %96 = vmatprep.subr.mxu0 0.0
  %97 = vmatpush1.msra.mxu0 0.0
  %98 = vmatprep.subr.mxu0 0.0
  %99 = vmatpush1.msra.mxu0 0.0
  %100 = vmatprep.subr.mxu0 0.0
  %101 = vmatpush1.msra.mxu0 0.0
  %102 = vmatprep.subr.mxu0 0.0
  %103 = vmatpush1.msra.mxu0 0.0
  %104 = vmatprep.mubr.f32.mxu0 0.0
  %105 = vmatmul.mubr.f32.gmra.mrb[0].mxu0 %v31
  %v106 = vpop.f32.mrb[0].mxu0
  %v107 = vadd.f32 %v22, %v106
  %v108 = vpop.f32.mrb[0].mxu0
  %109 = vmatprep.mubr.f32.mxu0 0.0
  %110 = vmatmul.mubr.f32.gmra.mrb[0].mxu0 %v34
  %v111 = vpop.f32.mrb[0].mxu0
  %v112 = vadd.f32 %v27, %v111
  %v113 = vpop.f32.mrb[0].mxu0
  %114 = vdwg.mxu0
  %v115 = vtanh.pop %v107
  %v116 = vtanh.pop %v112
  %117 = vst [vmem:[%s3] sm:$0xff] %v115
  %118 = vst [vmem:[%s3 + $0x8] sm:$0xff] %v116
  // Predicated region
  $region14: #{_lambda_.1} parent=0 // pred_check
    _
  $region15: #{_lambda_.1} parent=0 // pred_check_branch
    %120 = sbr.rel (0) target = $region17
  $region16: #{_lambda_.1} parent=0 // pred_region
    _
  $region17: #{_lambda_.1} parent=0 // pred_fallthru
    _
  // Predicated region
  $region18: #{_lambda_.1} parent=0 // pred_check
    _
  $region19: #{_lambda_.1} parent=0 // pred_check_branch
    %122 = sbr.rel (0) target = $region21
  $region20: #{_lambda_.1} parent=0 // pred_region
    _
  $region21: #{_lambda_.1} parent=0 // pred_fallthru
    _

</llo_original>
